<compile_context>
chip_gen: v7x
topology: tpu7x:2x2x1
jax: 0.10.0
libtpu: 0.0.40
codegen_flags: <defaults>
</compile_context>

<pallas_src>
import functools

import numpy as np
import jax
import jax.numpy as jnp
from jax.experimental import pallas as pl
from jax.experimental.pallas import tpu as pltpu


# ----------------------------- fused kernel -------------------------------------------------

def _fused_decoder_kernel(x_ref, w_ref, b_ref, g_ref, beta_ref, p_ref, o_ref, *, inv_cnt, eps):
    # Deconv as matmul + bias on the lane-dense packed layout: [Mp, Kp] @ [Kp, Np] -> [Mp, Np]
    y = jnp.dot(x_ref[...], w_ref[...], preferred_element_type=jnp.float32) + b_ref[...]

    # BatchNorm batch mean per channel (columns grouped by channel via p_ref, stays [1, Np]).
    col_sum = jnp.sum(y, axis=0, keepdims=True)                                        # [1, Np]
    mean = jnp.dot(col_sum, p_ref[...], preferred_element_type=jnp.float32) * inv_cnt  # [1, Np]

    # Two-pass (numerically stable) biased variance — y is VMEM-resident, so this is ~free.
    d = y - mean
    col_sq = jnp.sum(d * d, axis=0, keepdims=True)                                     # [1, Np]
    var = jnp.dot(col_sq, p_ref[...], preferred_element_type=jnp.float32) * inv_cnt    # [1, Np]

    # Normalize + affine + ReLU, all fused, single full-width store.
    scale = g_ref[...] * jax.lax.rsqrt(var + eps)
    o_ref[...] = jnp.maximum(d * scale + beta_ref[...], 0.0)


# ----------------------------- DecoderBlock forward ------------------------------------------

def decoder_block_forward(x_nchw, weight, bias, gamma, beta, *, scale_factor, eps=1e-5):
    """x_nchw: [N, C_in, H, W]; weight: [C_in, C_out, s, s] (PyTorch ConvTranspose2d layout).
    Returns [N, C_out, H*s, W*s] (NCHW, like PyTorch)."""
    s = int(scale_factor)
    N, C_in, H, W = x_nchw.shape
    C_out = weight.shape[1]
    Ncol = C_out * s * s            # columns of the un-packed deconv matmul
    M = N * H * W                   # un-packed rows

    # Lane-dense packing factor: pack `pack` rows side-by-side so the kernel's last dim is a
    # multiple of 128 lanes.
    pack = max(1, 128 // Ncol)
    while pack > 1 and M % pack != 0:
        pack //= 2
    Mp, Kp, Np = M // pack, pack * C_in, pack * Ncol

    # --- plain-JAX layout glue (tiny tensors) ---
    x_flat = jnp.transpose(x_nchw, (0, 2, 3, 1)).reshape(M, C_in).astype(jnp.float32)
    x_packed = x_flat.reshape(Mp, Kp)                                   # pure view

    w_flat = weight.reshape(C_in, Ncol).astype(jnp.float32)             # col = co*s*s + ki*s + kj
    w_pack = jnp.kron(jnp.eye(pack, dtype=jnp.float32), w_flat)         # [Kp, Np] block-diagonal
    b_pack = jnp.tile(jnp.repeat(bias.astype(jnp.float32), s * s), pack)[None, :]
    g_pack = jnp.tile(jnp.repeat(gamma.astype(jnp.float32), s * s), pack)[None, :]
    beta_pack = jnp.tile(jnp.repeat(beta.astype(jnp.float32), s * s), pack)[None, :]

    # Channel-group membership matrix: p_mat[j1, j2] = 1 iff packed columns j1, j2 belong to the
    # same BN channel.  col_stats @ p_mat == per-channel sums broadcast back per column.
    chan = (jnp.arange(Np) % Ncol) // (s * s)
    p_mat = (chan[:, None] == chan[None, :]).astype(jnp.float32)        # [Np, Np]

    # The fused kernel keeps the whole problem VMEM-resident (single grid step).
    vmem_bytes = 4 * (Mp * Kp + Kp * Np + Np * Np + 3 * Np + 2 * Mp * Np)
    assert vmem_bytes < 16 * 1024 * 1024, "Problem too large for single-step fused kernel"
    # TODO(synk): add a tiled two-pass variant (per-tile partial stats + second normalize pass)
    # for activations that do not fit in VMEM.

    inv_cnt = 1.0 / float(M * s * s)   # elements per BN channel = N * (H*s) * (W*s)

    o_packed = pl.pallas_call(
        functools.partial(_fused_decoder_kernel, inv_cnt=inv_cnt, eps=float(eps)),
        out_shape=jax.ShapeDtypeStruct((Mp, Np), jnp.float32),
        grid_spec=pltpu.PrefetchScalarGridSpec(
            num_scalar_prefetch=0,
            grid=(1,),
            in_specs=[
                pl.BlockSpec((Mp, Kp), lambda i: (0, 0)),    # packed activations
                pl.BlockSpec((Kp, Np), lambda i: (0, 0)),    # block-diagonal weight
                pl.BlockSpec((1, Np), lambda i: (0, 0)),     # bias (per packed column)
                pl.BlockSpec((1, Np), lambda i: (0, 0)),     # gamma (per packed column)
                pl.BlockSpec((1, Np), lambda i: (0, 0)),     # beta (per packed column)
                pl.BlockSpec((Np, Np), lambda i: (0, 0)),    # channel-group matrix
            ],
            out_specs=pl.BlockSpec((Mp, Np), lambda i: (0, 0)),
        ),
        compiler_params=pltpu.CompilerParams(dimension_semantics=("arbitrary",)),
    )(x_packed, w_pack, b_pack, g_pack, beta_pack, p_mat)

    # Pixel shuffle + back to NCHW in a single transpose:
    # [Mp, Np] == [M, Ncol] (same flat order) -> [N,H,W,Co,s,s] -> [N,Co,H,s,W,s] -> NCHW
    o = o_packed.reshape(N, H, W, C_out, s, s)
    o = jnp.transpose(o, (0, 3, 1, 4, 2, 5)).reshape(N, C_out, H * s, W * s)
    return o


# ----------------------------- pure-JAX reference for sanity check ---------------------------

def reference_forward(x_nchw, weight, bias, gamma, beta, *, scale_factor, eps=1e-5):
    s = scale_factor
    N, C_in, H, W = x_nchw.shape
    C_out = weight.shape[1]
    y = jnp.einsum("nchw,cokl->nohkwl", x_nchw, weight)          # [N, Co, H, s, W, s]
    y = y.reshape(N, C_out, H * s, W * s) + bias[None, :, None, None]
    mean = y.mean(axis=(0, 2, 3), keepdims=True)
    var = ((y - mean) ** 2).mean(axis=(0, 2, 3), keepdims=True)  # biased var (BN train mode)
    y = (y - mean) / jnp.sqrt(var + eps)
    y = y * gamma[None, :, None, None] + beta[None, :, None, None]
    return jnp.maximum(y, 0.0)


# ----------------------------- main -----------------------------------------------------------

if __name__ == "__main__":
    # Module config: DecoderBlock(in_channels=4, out_channel=8, scale_factor=2)
    in_channels, out_channel, scale_factor = 4, 8, 2
    N, H, W = 2, 16, 16

    key = jax.random.PRNGKey(0)
    kx, kw, kb = jax.random.split(key, 3)

    x = jax.random.normal(kx, (N, in_channels, H, W), dtype=jnp.float32)
    # ConvTranspose2d weight: [C_in, C_out, k, k]; deterministic init
    weight = 0.1 * jax.random.normal(kw, (in_channels, out_channel, scale_factor, scale_factor),
                                     dtype=jnp.float32)
    bias = 0.05 * jax.random.normal(kb, (out_channel,), dtype=jnp.float32)
    # BatchNorm2d default init: gamma=1, beta=0
    gamma = jnp.ones((out_channel,), dtype=jnp.float32)
    beta = jnp.zeros((out_channel,), dtype=jnp.float32)

    out = decoder_block_forward(x, weight, bias, gamma, beta, scale_factor=scale_factor)
    out = jax.block_until_ready(out)

    ref = reference_forward(x, weight, bias, gamma, beta, scale_factor=scale_factor)
    assert out.shape == (N, out_channel, H * scale_factor, W * scale_factor)
    np.testing.assert_allclose(np.asarray(out), np.asarray(ref), atol=2e-3, rtol=2e-3)

    print("KERNEL_OK")
</pallas_src>

<mosaic_0001>
module attributes {stable_mosaic.version = 11 : i64} {
  func.func @_fused_decoder_kernel(%arg0: i32, %arg1: memref<128x16xf32, #tpu.memory_space<vmem>>, %arg2: memref<16x128xf32, #tpu.memory_space<vmem>>, %arg3: memref<1x128xf32, #tpu.memory_space<vmem>>, %arg4: memref<1x128xf32, #tpu.memory_space<vmem>>, %arg5: memref<1x128xf32, #tpu.memory_space<vmem>>, %arg6: memref<128x128xf32, #tpu.memory_space<vmem>>, %arg7: memref<128x128xf32, #tpu.memory_space<vmem>>) attributes {dimension_semantics = [#tpu.dimension_semantics<arbitrary>], iteration_bounds = array<i64: 1>, scalar_prefetch = 0 : i64, scratch_operands = 0 : i64, tpu.core_type = #tpu.core_type<tc>, window_params = [{pipeline_mode = #tpu.pipeline_mode<synchronous>, transform_indices = @transform_0, window_bounds = array<i64: 128, 16>}, {pipeline_mode = #tpu.pipeline_mode<synchronous>, transform_indices = @transform_1, window_bounds = array<i64: 16, 128>}, {pipeline_mode = #tpu.pipeline_mode<synchronous>, transform_indices = @transform_2, window_bounds = array<i64: 1, 128>}, {pipeline_mode = #tpu.pipeline_mode<synchronous>, transform_indices = @transform_3, window_bounds = array<i64: 1, 128>}, {pipeline_mode = #tpu.pipeline_mode<synchronous>, transform_indices = @transform_4, window_bounds = array<i64: 1, 128>}, {pipeline_mode = #tpu.pipeline_mode<synchronous>, transform_indices = @transform_5, window_bounds = array<i64: 128, 128>}, {pipeline_mode = #tpu.pipeline_mode<synchronous>, transform_indices = @transform_6, window_bounds = array<i64: 128, 128>}]} {
    %c0 = arith.constant 0 : index
    %c0_0 = arith.constant 0 : index
    %0 = vector.load %arg1[%c0, %c0_0] : memref<128x16xf32, #tpu.memory_space<vmem>>, vector<128x16xf32>
    %c0_1 = arith.constant 0 : index
    %c0_2 = arith.constant 0 : index
    %1 = vector.load %arg2[%c0_1, %c0_2] : memref<16x128xf32, #tpu.memory_space<vmem>>, vector<16x128xf32>
    %cst = arith.constant dense<0.000000e+00> : vector<128x128xf32>
    %2 = tpu.matmul %0, %1, %cst {dimension_numbers = #tpu.dot_dimension_numbers<[1], [0], [0], [1], [0, 0, 1, 1], [], []>} : vector<128x16xf32>, vector<16x128xf32>, vector<128x128xf32> -> vector<128x128xf32>
    %c0_3 = arith.constant 0 : index
    %c0_4 = arith.constant 0 : index
    %3 = vector.load %arg3[%c0_3, %c0_4] : memref<1x128xf32, #tpu.memory_space<vmem>>, vector<1x128xf32>
    %4 = vector.broadcast %3 : vector<1x128xf32> to vector<128x128xf32>
    %5 = arith.addf %2, %4 : vector<128x128xf32>
    %cst_5 = arith.constant dense<0.000000e+00> : vector<128xf32>
    %6 = vector.multi_reduction <add>, %5, %cst_5 [0] : vector<128x128xf32> to vector<128xf32>
    %7 = vector.shape_cast %6 : vector<128xf32> to vector<1x128xf32>
    %c0_6 = arith.constant 0 : index
    %c0_7 = arith.constant 0 : index
    %8 = vector.load %arg6[%c0_6, %c0_7] : memref<128x128xf32, #tpu.memory_space<vmem>>, vector<128x128xf32>
    %cst_8 = arith.constant dense<0.000000e+00> : vector<1x128xf32>
    %9 = tpu.matmul %7, %8, %cst_8 {dimension_numbers = #tpu.dot_dimension_numbers<[1], [0], [0], [1], [0, 0, 1, 1], [], []>} : vector<1x128xf32>, vector<128x128xf32>, vector<1x128xf32> -> vector<1x128xf32>
    %cst_9 = arith.constant 4.8828125E-4 : f32
    %10 = vector.broadcast %cst_9 : f32 to vector<1x128xf32>
    %11 = arith.mulf %9, %10 : vector<1x128xf32>
    %12 = vector.broadcast %11 : vector<1x128xf32> to vector<128x128xf32>
    %13 = arith.subf %5, %12 : vector<128x128xf32>
    %14 = arith.mulf %13, %13 : vector<128x128xf32>
    %cst_10 = arith.constant dense<0.000000e+00> : vector<128xf32>
    %15 = vector.multi_reduction <add>, %14, %cst_10 [0] : vector<128x128xf32> to vector<128xf32>
    %16 = vector.shape_cast %15 : vector<128xf32> to vector<1x128xf32>
    %c0_11 = arith.constant 0 : index
    %c0_12 = arith.constant 0 : index
    %17 = vector.load %arg6[%c0_11, %c0_12] : memref<128x128xf32, #tpu.memory_space<vmem>>, vector<128x128xf32>
    %cst_13 = arith.constant dense<0.000000e+00> : vector<1x128xf32>
    %18 = tpu.matmul %16, %17, %cst_13 {dimension_numbers = #tpu.dot_dimension_numbers<[1], [0], [0], [1], [0, 0, 1, 1], [], []>} : vector<1x128xf32>, vector<128x128xf32>, vector<1x128xf32> -> vector<1x128xf32>
    %cst_14 = arith.constant 4.8828125E-4 : f32
    %19 = vector.broadcast %cst_14 : f32 to vector<1x128xf32>
    %20 = arith.mulf %18, %19 : vector<1x128xf32>
    %c0_15 = arith.constant 0 : index
    %c0_16 = arith.constant 0 : index
    %21 = vector.load %arg4[%c0_15, %c0_16] : memref<1x128xf32, #tpu.memory_space<vmem>>, vector<1x128xf32>
    %cst_17 = arith.constant 9.99999974E-6 : f32
    %22 = vector.broadcast %cst_17 : f32 to vector<1x128xf32>
    %23 = arith.addf %20, %22 : vector<1x128xf32>
    %24 = math.rsqrt %23 : vector<1x128xf32>
    %25 = arith.mulf %21, %24 : vector<1x128xf32>
    %26 = vector.broadcast %25 : vector<1x128xf32> to vector<128x128xf32>
    %27 = arith.mulf %13, %26 : vector<128x128xf32>
    %c0_18 = arith.constant 0 : index
    %c0_19 = arith.constant 0 : index
    %28 = vector.load %arg5[%c0_18, %c0_19] : memref<1x128xf32, #tpu.memory_space<vmem>>, vector<1x128xf32>
    %29 = vector.broadcast %28 : vector<1x128xf32> to vector<128x128xf32>
    %30 = arith.addf %27, %29 : vector<128x128xf32>
    %cst_20 = arith.constant 0.000000e+00 : f32
    %31 = vector.broadcast %cst_20 : f32 to vector<128x128xf32>
    %32 = arith.maximumf %30, %31 : vector<128x128xf32>
    %c0_21 = arith.constant 0 : index
    %c0_22 = arith.constant 0 : index
    %33 = vector.load %arg7[%c0_21, %c0_22] : memref<128x128xf32, #tpu.memory_space<vmem>>, vector<128x128xf32>
    tpu.vector_store %arg7[%c0_21, %c0_22], %32 {strides = array<i32>} : memref<128x128xf32, #tpu.memory_space<vmem>>, vector<128x128xf32>,
    return
  }
  func.func @transform_0(%arg0: i32) -> (i32, i32) {
    %c0_i32 = arith.constant 0 : i32
    %c0_i32_0 = arith.constant 0 : i32
    %c0_i32_1 = arith.constant 0 : i32
    return %c0_i32, %c0_i32_0 : i32, i32
  }
  func.func @transform_1(%arg0: i32) -> (i32, i32) {
    %c0_i32 = arith.constant 0 : i32
    %c0_i32_0 = arith.constant 0 : i32
    %c0_i32_1 = arith.constant 0 : i32
    return %c0_i32, %c0_i32_0 : i32, i32
  }
  func.func @transform_2(%arg0: i32) -> (i32, i32) {
    %c0_i32 = arith.constant 0 : i32
    %c0_i32_0 = arith.constant 0 : i32
    %c0_i32_1 = arith.constant 0 : i32
    return %c0_i32, %c0_i32_0 : i32, i32
  }
  func.func @transform_3(%arg0: i32) -> (i32, i32) {
    %c0_i32 = arith.constant 0 : i32
    %c0_i32_0 = arith.constant 0 : i32
    %c0_i32_1 = arith.constant 0 : i32
    return %c0_i32, %c0_i32_0 : i32, i32
  }
  func.func @transform_4(%arg0: i32) -> (i32, i32) {
    %c0_i32 = arith.constant 0 : i32
    %c0_i32_0 = arith.constant 0 : i32
    %c0_i32_1 = arith.constant 0 : i32
    return %c0_i32, %c0_i32_0 : i32, i32
  }
  func.func @transform_5(%arg0: i32) -> (i32, i32) {
    %c0_i32 = arith.constant 0 : i32
    %c0_i32_0 = arith.constant 0 : i32
    %c0_i32_1 = arith.constant 0 : i32
    return %c0_i32, %c0_i32_0 : i32, i32
  }
  func.func @transform_6(%arg0: i32) -> (i32, i32) {
    %c0_i32 = arith.constant 0 : i32
    %c0_i32_0 = arith.constant 0 : i32
    %c0_i32_1 = arith.constant 0 : i32
    return %c0_i32, %c0_i32_0 : i32, i32
  }
}

</mosaic_0001>

<llo_original>
// kernel: tpu_custom_call.1
$region0: #{tpu_custom_call.1}
  #allocation0 [shape = 'u32[]', space=smem, size = 0x4, offset = 0x4, fixed_abs, tag = 'smem constant byte address 0x4 - core index']
  #allocation1 [shape = 'u32[144,128]{1,0:T(1,128)}', space=vmem, size = 0x12000, scoped, tag = 'internal scratch']
  %s0 = inlined_call_operand.vmem [shape: f32[128,16], index: 0, kind: input, shape index: {}]
  %s1 = inlined_call_operand.vmem [shape: f32[16,128], index: 1, kind: input, shape index: {}]
  %s2 = inlined_call_operand.vmem [shape: f32[1,128], index: 2, kind: input, shape index: {}]
  %s3 = inlined_call_operand.vmem [shape: f32[1,128], index: 3, kind: input, shape index: {}]
  %s4 = inlined_call_operand.vmem [shape: f32[1,128], index: 4, kind: input, shape index: {}]
  %s5 = inlined_call_operand.vmem [shape: f32[128,128], index: 5, kind: input, shape index: {}]
  %s6 = inlined_call_operand.hbm [shape: f32[128,128], index: 6, kind: output, shape index: {}]
  %s7 = sld [smem:[#allocation0]]
  $region34: #{tpu_custom_call.1} parent=0
    _
  %s9 = ssub.s32 1, %s7
  %s10 = scalar_select 0, %s9, %s7
  $region1: #{tpu_custom_call.1} parent=0
    #allocation2 [shape = 'u8[65536]{0}', space=vmem, size = 0x10000, scoped, tag = 'output window, operand 0, single buffered']
    #allocation3 [shape = 's32[1]{0}', space=sflag, size = 0x4, scoped, tag = 'scoped memory for tpu_custom_call.1']
    %11 = vsyncpa [#allocation3], 0
    // Predicated region
    $region2: #{tpu_custom_call.1} parent=1 // pred_check
      _
    $region3: #{tpu_custom_call.1} parent=1 // pred_check_branch
      %13 = sbr.rel (0) target = $region5
    $region4: #{tpu_custom_call.1} parent=1 // pred_region
      _
    $region5: #{tpu_custom_call.1} parent=1 // pred_fallthru
      _
    // Predicated region
    $region6: #{tpu_custom_call.1} parent=1 // pred_check
      _
    $region7: #{tpu_custom_call.1} parent=1 // pred_check_branch
      %15 = sbr.rel (0) target = $region9
    $region8: #{tpu_custom_call.1} parent=1 // pred_region
      _
    $region9: #{tpu_custom_call.1} parent=1 // pred_fallthru
      _
    // Predicated region
    $region10: #{tpu_custom_call.1} parent=1 // pred_check
      _
    $region11: #{tpu_custom_call.1} parent=1 // pred_check_branch
      %17 = sbr.rel (0) target = $region13
    $region12: #{tpu_custom_call.1} parent=1 // pred_region
      _
    $region13: #{tpu_custom_call.1} parent=1 // pred_fallthru
      _
    // Predicated region
    $region14: #{tpu_custom_call.1} parent=1 // pred_check
      _
    $region15: #{tpu_custom_call.1} parent=1 // pred_check_branch
      %19 = sbr.rel (0) target = $region17
    $region16: #{tpu_custom_call.1} parent=1 // pred_region
      _
    $region17: #{tpu_custom_call.1} parent=1 // pred_fallthru
      _
    // Predicated region
    $region18: #{tpu_custom_call.1} parent=1 // pred_check
      _
    $region19: #{tpu_custom_call.1} parent=1 // pred_check_branch
      %21 = sbr.rel (0) target = $region21
    $region20: #{tpu_custom_call.1} parent=1 // pred_region
      _
    $region21: #{tpu_custom_call.1} parent=1 // pred_fallthru
      _
    // Predicated region
    $region22: #{tpu_custom_call.1} parent=1 // pred_check
      _
    $region23: #{tpu_custom_call.1} parent=1 // pred_check_branch
      %23 = sbr.rel (0) target = $region25
    $region24: #{tpu_custom_call.1} parent=1 // pred_region
      _
    $region25: #{tpu_custom_call.1} parent=1 // pred_fallthru
      _
    %v24 = vld [vmem:[%s0] sm:$0xff]
    %v25 = vld [vmem:[%s0 + $0x8] sm:$0xff]
    %v26 = vld [vmem:[%s0 + $0x10] sm:$0xff]
    %v27 = vld [vmem:[%s0 + $0x18] sm:$0xff]
    %v28 = vld [vmem:[%s0 + $0x20] sm:$0xff]
    %v29 = vld [vmem:[%s0 + $0x28] sm:$0xff]
    %v30 = vld [vmem:[%s0 + $0x30] sm:$0xff]
    %v31 = vld [vmem:[%s0 + $0x38] sm:$0xff]
    %v32 = vld [vmem:[%s0 + $0x40] sm:$0xff]
    %v33 = vld [vmem:[%s0 + $0x48] sm:$0xff]
    %v34 = vld [vmem:[%s0 + $0x50] sm:$0xff]
    %v35 = vld [vmem:[%s0 + $0x58] sm:$0xff]
    %v36 = vld [vmem:[%s0 + $0x60] sm:$0xff]
    %v37 = vld [vmem:[%s0 + $0x68] sm:$0xff]
    %v38 = vld [vmem:[%s0 + $0x70] sm:$0xff]
    %v39 = vld [vmem:[%s0 + $0x78] sm:$0xff]
    %v40 = vld [vmem:[%s1] sm:$0xff]
    %v41 = vld [vmem:[%s1 + $0x8] sm:$0xff]
    %v42 = vld [vmem:[%s2] sm:$0x1]
    %v44 = vlaneseq
    %v45 = vshrl.u32 %v44, 7
    %v46 = vsub.s32 0, %v45
    %v47 = vrot.slane %v42, %v46
    %vm49 = vcmask 130048
    %v51 = vsel %vm49, %v24, 0
    %v54 = vsel %vm49, %v25, 0
    %v57 = vsel %vm49, %v26, 0
    %v60 = vsel %vm49, %v27, 0
    %v63 = vsel %vm49, %v28, 0
    %v66 = vsel %vm49, %v29, 0
    %v69 = vsel %vm49, %v30, 0
    %v72 = vsel %vm49, %v31, 0
    %v75 = vsel %vm49, %v32, 0
    %v78 = vsel %vm49, %v33, 0
    %v81 = vsel %vm49, %v34, 0
    %v84 = vsel %vm49, %v35, 0
    %v87 = vsel %vm49, %v36, 0
    %v90 = vsel %vm49, %v37, 0
    %v93 = vsel %vm49, %v38, 0
    %v96 = vsel %vm49, %v39, 0
    %98 = vmatprep.subr.mxu0 0.0
    %99 = vmatpush1.msra.mxu0 %v40
    %100 = vmatprep.subr.mxu0 0.0
    %101 = vmatpush1.msra.mxu0 %v41
    %102 = vmatprep.subr.mxu0 0.0
    %103 = vmatpush1.msra.mxu0 0.0
    %104 = vmatprep.subr.mxu0 0.0
    %105 = vmatpush1.msra.mxu0 0.0
    %106 = vmatprep.subr.mxu0 0.0
    %107 = vmatpush1.msra.mxu0 0.0
    %108 = vmatprep.subr.mxu0 0.0
    %109 = vmatpush1.msra.mxu0 0.0
    %110 = vmatprep.subr.mxu0 0.0
    %111 = vmatpush1.msra.mxu0 0.0
    %112 = vmatprep.subr.mxu0 0.0
    %113 = vmatpush1.msra.mxu0 0.0
    %114 = vmatprep.subr.mxu0 0.0
    %115 = vmatpush1.msra.mxu0 0.0
    %116 = vmatprep.subr.mxu0 0.0
    %117 = vmatpush1.msra.mxu0 0.0
    %118 = vmatprep.subr.mxu0 0.0
    %119 = vmatpush1.msra.mxu0 0.0
    %120 = vmatprep.subr.mxu0 0.0
    %121 = vmatpush1.msra.mxu0 0.0
    %122 = vmatprep.subr.mxu0 0.0
    %123 = vmatpush1.msra.mxu0 0.0
    %124 = vmatprep.subr.mxu0 0.0
    %125 = vmatpush1.msra.mxu0 0.0
    %126 = vmatprep.subr.mxu0 0.0
    %127 = vmatpush1.msra.mxu0 0.0
    %128 = vmatprep.subr.mxu0 0.0
    %129 = vmatpush1.msra.mxu0 0.0
    %130 = vmatprep.subr.mxu0 0.0
    %131 = vmatpush1.msra.mxu0 0.0
    %132 = vmatprep.subr.mxu0 0.0
    %133 = vmatpush1.msra.mxu0 0.0
    %134 = vmatprep.subr.mxu0 0.0
    %135 = vmatpush1.msra.mxu0 0.0
    %136 = vmatprep.subr.mxu0 0.0
    %137 = vmatpush1.msra.mxu0 0.0
    %138 = vmatprep.subr.mxu0 0.0
    %139 = vmatpush1.msra.mxu0 0.0
    %140 = vmatprep.subr.mxu0 0.0
    %141 = vmatpush1.msra.mxu0 0.0
    %142 = vmatprep.subr.mxu0 0.0
    %143 = vmatpush1.msra.mxu0 0.0
    %144 = vmatprep.subr.mxu0 0.0
    %145 = vmatpush1.msra.mxu0 0.0
    %146 = vmatprep.subr.mxu0 0.0
    %147 = vmatpush1.msra.mxu0 0.0
    %148 = vmatprep.subr.mxu0 0.0
    %149 = vmatpush1.msra.mxu0 0.0
    %150 = vmatprep.subr.mxu0 0.0
    %151 = vmatpush1.msra.mxu0 0.0
    %152 = vmatprep.subr.mxu0 0.0
    %153 = vmatpush1.msra.mxu0 0.0
    %154 = vmatprep.subr.mxu0 0.0
    %155 = vmatpush1.msra.mxu0 0.0
    %156 = vmatprep.subr.mxu0 0.0
    %157 = vmatpush1.msra.mxu0 0.0
    %158 = vmatprep.subr.mxu0 0.0
    %159 = vmatpush1.msra.mxu0 0.0
    %160 = vmatprep.subr.mxu0 0.0
    %161 = vmatpush1.msra.mxu0 0.0
    %162 = vmatprep.mubr.f32.mxu0 0.0
    %163 = vmatmul.mubr.f32.gmra.mrb[0].mxu0 %v51
    %v164 = vpop.f32.mrb[0].mxu0
    %v165 = vadd.f32 %v47, %v164
    %v166 = vpop.f32.mrb[0].mxu0
    %167 = vmatprep.mubr.f32.mxu0 0.0
    %168 = vmatmul.mubr.f32.gmra.mrb[0].mxu0 %v54
    %v169 = vpop.f32.mrb[0].mxu0
    %v170 = vadd.f32 %v47, %v169
    %v171 = vpop.f32.mrb[0].mxu0
    %172 = vmatprep.mubr.f32.mxu0 0.0
    %173 = vmatmul.mubr.f32.gmra.mrb[0].mxu0 %v57
    %v174 = vpop.f32.mrb[0].mxu0
    %v175 = vadd.f32 %v47, %v174
    %v176 = vpop.f32.mrb[0].mxu0
    %177 = vmatprep.mubr.f32.mxu0 0.0
    %178 = vmatmul.mubr.f32.gmra.mrb[0].mxu0 %v60
    %v179 = vpop.f32.mrb[0].mxu0
    %v180 = vadd.f32 %v47, %v179
    %v181 = vpop.f32.mrb[0].mxu0
    %182 = vmatprep.mubr.f32.mxu0 0.0
    %183 = vmatmul.mubr.f32.gmra.mrb[0].mxu0 %v63
    %v184 = vpop.f32.mrb[0].mxu0
    %v185 = vadd.f32 %v47, %v184
    %v186 = vpop.f32.mrb[0].mxu0
    %187 = vmatprep.mubr.f32.mxu0 0.0
    %188 = vmatmul.mubr.f32.gmra.mrb[0].mxu0 %v66
    %v189 = vpop.f32.mrb[0].mxu0
    %v190 = vadd.f32 %v47, %v189
    %v191 = vpop.f32.mrb[0].mxu0
    %192 = vmatprep.mubr.f32.mxu0 0.0
    %193 = vmatmul.mubr.f32.gmra.mrb[0].mxu0 %v69
    %v194 = vpop.f32.mrb[0].mxu0
    %v195 = vadd.f32 %v47, %v194
    %v196 = vpop.f32.mrb[0].mxu0
    %197 = vmatprep.mubr.f32.mxu0 0.0
    %198 = vmatmul.mubr.f32.gmra.mrb[0].mxu0 %v72
    %v199 = vpop.f32.mrb[0].mxu0
    %v200 = vadd.f32 %v47, %v199
    %v201 = vpop.f32.mrb[0].mxu0
    %202 = vmatprep.mubr.f32.mxu0 0.0
    %203 = vmatmul.mubr.f32.gmra.mrb[0].mxu0 %v75
    %v204 = vpop.f32.mrb[0].mxu0
    %v205 = vadd.f32 %v47, %v204
    %v206 = vpop.f32.mrb[0].mxu0
    %207 = vmatprep.mubr.f32.mxu0 0.0
    %208 = vmatmul.mubr.f32.gmra.mrb[0].mxu0 %v78
    %v209 = vpop.f32.mrb[0].mxu0
    %v210 = vadd.f32 %v47, %v209
    %v211 = vpop.f32.mrb[0].mxu0
    %212 = vmatprep.mubr.f32.mxu0 0.0
    %213 = vmatmul.mubr.f32.gmra.mrb[0].mxu0 %v81
    %v214 = vpop.f32.mrb[0].mxu0
    %v215 = vadd.f32 %v47, %v214
    %v216 = vpop.f32.mrb[0].mxu0
    %217 = vmatprep.mubr.f32.mxu0 0.0
    %218 = vmatmul.mubr.f32.gmra.mrb[0].mxu0 %v84
    %v219 = vpop.f32.mrb[0].mxu0
    %v220 = vadd.f32 %v47, %v219
    %v221 = vpop.f32.mrb[0].mxu0
    %222 = vmatprep.mubr.f32.mxu0 0.0
    %223 = vmatmul.mubr.f32.gmra.mrb[0].mxu0 %v87
    %v224 = vpop.f32.mrb[0].mxu0
    %v225 = vadd.f32 %v47, %v224
    %v226 = vpop.f32.mrb[0].mxu0
    %227 = vmatprep.mubr.f32.mxu0 0.0
    %228 = vmatmul.mubr.f32.gmra.mrb[0].mxu0 %v90
    %v229 = vpop.f32.mrb[0].mxu0
    %v230 = vadd.f32 %v47, %v229
    %v231 = vpop.f32.mrb[0].mxu0
    %232 = vmatprep.mubr.f32.mxu0 0.0
    %233 = vmatmul.mubr.f32.gmra.mrb[0].mxu0 %v93
    %v234 = vpop.f32.mrb[0].mxu0
    %v235 = vadd.f32 %v47, %v234
    %v236 = vpop.f32.mrb[0].mxu0
    %237 = vmatprep.mubr.f32.mxu0 0.0
    %238 = vmatmul.mubr.f32.gmra.mrb[0].mxu0 %v96
    %v239 = vpop.f32.mrb[0].mxu0
    %v240 = vadd.f32 %v47, %v239
    %v241 = vpop.f32.mrb[0].mxu0
    %242 = vdwg.mxu0
    %v243 = vadd.f32 %v165, %v170
    %v244 = vadd.f32 %v243, %v175
    %v245 = vadd.f32 %v244, %v180
    %v246 = vadd.f32 %v245, %v185
    %v247 = vadd.f32 %v246, %v190
    %v248 = vadd.f32 %v247, %v195
    %v249 = vadd.f32 %v248, %v200
    %v250 = vadd.f32 %v249, %v205
    %v251 = vadd.f32 %v250, %v210
    %v252 = vadd.f32 %v251, %v215
    %v253 = vadd.f32 %v252, %v220
    %v254 = vadd.f32 %v253, %v225
    %v255 = vadd.f32 %v254, %v230
    %v256 = vadd.f32 %v255, %v235
    %v257 = vadd.f32 %v256, %v240
    %v258 = vrot.slane %v257, 4
    %v259 = vadd.f32 %v257, %v258
    %v260 = vrot.slane %v259, 2
    %v261 = vadd.f32 %v259, %v260
    %v262 = vrot.slane %v261, 1
    %v263 = vadd.f32 %v261, %v262
    %v264 = vld [vmem:[%s5] sm:$0xff]
    %v265 = vld [vmem:[%s5 + $0x8] sm:$0xff]
    %v266 = vld [vmem:[%s5 + $0x10] sm:$0xff]
    %v267 = vld [vmem:[%s5 + $0x18] sm:$0xff]
    %v268 = vld [vmem:[%s5 + $0x20] sm:$0xff]
    %v269 = vld [vmem:[%s5 + $0x28] sm:$0xff]
    %v270 = vld [vmem:[%s5 + $0x30] sm:$0xff]
    %v271 = vld [vmem:[%s5 + $0x38] sm:$0xff]
    %v272 = vld [vmem:[%s5 + $0x40] sm:$0xff]
    %v273 = vld [vmem:[%s5 + $0x48] sm:$0xff]
    %v274 = vld [vmem:[%s5 + $0x50] sm:$0xff]
    %v275 = vld [vmem:[%s5 + $0x58] sm:$0xff]
    %v276 = vld [vmem:[%s5 + $0x60] sm:$0xff]
    %v277 = vld [vmem:[%s5 + $0x68] sm:$0xff]
    %v278 = vld [vmem:[%s5 + $0x70] sm:$0xff]
    %v279 = vld [vmem:[%s5 + $0x78] sm:$0xff]
    %280 = vmatprep.subr.mxu0 0.0
    %281 = vmatpush1.msra.mxu0 %v264
    %282 = vmatprep.subr.mxu0 0.0
    %283 = vmatpush1.msra.mxu0 %v265
    %284 = vmatprep.subr.mxu0 0.0
    %285 = vmatpush1.msra.mxu0 %v266
    %286 = vmatprep.subr.mxu0 0.0
    %287 = vmatpush1.msra.mxu0 %v267
    %288 = vmatprep.subr.mxu0 0.0
    %289 = vmatpush1.msra.mxu0 %v268
    %290 = vmatprep.subr.mxu0 0.0
    %291 = vmatpush1.msra.mxu0 %v269
    %292 = vmatprep.subr.mxu0 0.0
    %293 = vmatpush1.msra.mxu0 %v270
    %294 = vmatprep.subr.mxu0 0.0
    %295 = vmatpush1.msra.mxu0 %v271
    %296 = vmatprep.subr.mxu0 0.0
    %297 = vmatpush1.msra.mxu0 %v272
    %298 = vmatprep.subr.mxu0 0.0
    %299 = vmatpush1.msra.mxu0 %v273
    %300 = vmatprep.subr.mxu0 0.0
    %301 = vmatpush1.msra.mxu0 %v274
    %302 = vmatprep.subr.mxu0 0.0
    %303 = vmatpush1.msra.mxu0 %v275
    %304 = vmatprep.subr.mxu0 0.0
    %305 = vmatpush1.msra.mxu0 %v276
    %306 = vmatprep.subr.mxu0 0.0
    %307 = vmatpush1.msra.mxu0 %v277
    %308 = vmatprep.subr.mxu0 0.0
    %309 = vmatpush1.msra.mxu0 %v278
    %310 = vmatprep.subr.mxu0 0.0
    %311 = vmatpush1.msra.mxu0 %v279
    %312 = vmatprep.subr.mxu0 0.0
    %313 = vmatpush1.msra.mxu0 0.0
    %314 = vmatprep.subr.mxu0 0.0
    %315 = vmatpush1.msra.mxu0 0.0
    %316 = vmatprep.subr.mxu0 0.0
    %317 = vmatpush1.msra.mxu0 0.0
    %318 = vmatprep.subr.mxu0 0.0
    %319 = vmatpush1.msra.mxu0 0.0
    %320 = vmatprep.subr.mxu0 0.0
    %321 = vmatpush1.msra.mxu0 0.0
    %322 = vmatprep.subr.mxu0 0.0
    %323 = vmatpush1.msra.mxu0 0.0
    %324 = vmatprep.subr.mxu0 0.0
    %325 = vmatpush1.msra.mxu0 0.0
    %326 = vmatprep.subr.mxu0 0.0
    %327 = vmatpush1.msra.mxu0 0.0
    %328 = vmatprep.subr.mxu0 0.0
    %329 = vmatpush1.msra.mxu0 0.0
    %330 = vmatprep.subr.mxu0 0.0
    %331 = vmatpush1.msra.mxu0 0.0
    %332 = vmatprep.subr.mxu0 0.0
    %333 = vmatpush1.msra.mxu0 0.0
    %334 = vmatprep.subr.mxu0 0.0
    %335 = vmatpush1.msra.mxu0 0.0
    %336 = vmatprep.subr.mxu0 0.0
    %337 = vmatpush1.msra.mxu0 0.0
    %338 = vmatprep.subr.mxu0 0.0
    %339 = vmatpush1.msra.mxu0 0.0
    %340 = vmatprep.subr.mxu0 0.0
    %341 = vmatpush1.msra.mxu0 0.0
    %342 = vmatprep.subr.mxu0 0.0
    %343 = vmatpush1.msra.mxu0 0.0
    %344 = vmatprep.mubr.f32.mxu0 0.0
    %345 = vmatmul.mubr.f32.gmra.mrb[0].mxu0 %v263
    %v346 = vpop.f32.mrb[0].mxu0
    %v347 = vadd.f32 0.0, %v346
    %v348 = vpop.f32.mrb[0].mxu0
    %349 = vdwg.mxu0
    %v350 = vmul.f32 %v347, 0.00048828125
    %v351 = vlaneseq
    %v352 = vshrl.u32 %v351, 7
    %v353 = vsub.s32 0, %v352
    %v354 = vrot.slane %v350, %v353
    %v355 = vsub.f32 %v165, %v354
    %v356 = vsub.f32 %v170, %v354
    %v357 = vsub.f32 %v175, %v354
    %v358 = vsub.f32 %v180, %v354
    %v359 = vsub.f32 %v185, %v354
    %v360 = vsub.f32 %v190, %v354
    %v361 = vsub.f32 %v195, %v354
    %v362 = vsub.f32 %v200, %v354
    %v363 = vsub.f32 %v205, %v354
    %v364 = vsub.f32 %v210, %v354
    %v365 = vsub.f32 %v215, %v354
    %v366 = vsub.f32 %v220, %v354
    %v367 = vsub.f32 %v225, %v354
    %v368 = vsub.f32 %v230, %v354
    %v369 = vsub.f32 %v235, %v354
    %v370 = vsub.f32 %v240, %v354
    %v371 = vmul.f32 %v355, %v355
    %v372 = vmul.f32 %v356, %v356
    %v373 = vmul.f32 %v357, %v357
    %v374 = vmul.f32 %v358, %v358
    %v375 = vmul.f32 %v359, %v359
    %v376 = vmul.f32 %v360, %v360
    %v377 = vmul.f32 %v361, %v361
    %v378 = vmul.f32 %v362, %v362
    %v379 = vmul.f32 %v363, %v363
    %v380 = vmul.f32 %v364, %v364
    %v381 = vmul.f32 %v365, %v365
    %v382 = vmul.f32 %v366, %v366
    %v383 = vmul.f32 %v367, %v367
    %v384 = vmul.f32 %v368, %v368
    %v385 = vmul.f32 %v369, %v369
    %v386 = vmul.f32 %v370, %v370
    %v387 = vadd.f32 %v371, %v372
    %v388 = vadd.f32 %v387, %v373
    %v389 = vadd.f32 %v388, %v374
    %v390 = vadd.f32 %v389, %v375
    %v391 = vadd.f32 %v390, %v376
    %v392 = vadd.f32 %v391, %v377
    %v393 = vadd.f32 %v392, %v378
    %v394 = vadd.f32 %v393, %v379
    %v395 = vadd.f32 %v394, %v380
    %v396 = vadd.f32 %v395, %v381
    %v397 = vadd.f32 %v396, %v382
    %v398 = vadd.f32 %v397, %v383
    %v399 = vadd.f32 %v398, %v384
    %v400 = vadd.f32 %v399, %v385
    %v401 = vadd.f32 %v400, %v386
    %v402 = vrot.slane %v401, 4
    %v403 = vadd.f32 %v401, %v402
    %v404 = vrot.slane %v403, 2
    %v405 = vadd.f32 %v403, %v404
    %v406 = vrot.slane %v405, 1
    %v407 = vadd.f32 %v405, %v406
    %408 = vmatprep.subr.mxu0 0.0
    %409 = vmatpush1.msra.mxu0 %v264
    %410 = vmatprep.subr.mxu0 0.0
    %411 = vmatpush1.msra.mxu0 %v265
    %412 = vmatprep.subr.mxu0 0.0
    %413 = vmatpush1.msra.mxu0 %v266
    %414 = vmatprep.subr.mxu0 0.0
    %415 = vmatpush1.msra.mxu0 %v267
    %416 = vmatprep.subr.mxu0 0.0
    %417 = vmatpush1.msra.mxu0 %v268
    %418 = vmatprep.subr.mxu0 0.0
    %419 = vmatpush1.msra.mxu0 %v269
    %420 = vmatprep.subr.mxu0 0.0
    %421 = vmatpush1.msra.mxu0 %v270
    %422 = vmatprep.subr.mxu0 0.0
    %423 = vmatpush1.msra.mxu0 %v271
    %424 = vmatprep.subr.mxu0 0.0
    %425 = vmatpush1.msra.mxu0 %v272
    %426 = vmatprep.subr.mxu0 0.0
    %427 = vmatpush1.msra.mxu0 %v273
    %428 = vmatprep.subr.mxu0 0.0
    %429 = vmatpush1.msra.mxu0 %v274
    %430 = vmatprep.subr.mxu0 0.0
    %431 = vmatpush1.msra.mxu0 %v275
    %432 = vmatprep.subr.mxu0 0.0
    %433 = vmatpush1.msra.mxu0 %v276
    %434 = vmatprep.subr.mxu0 0.0
    %435 = vmatpush1.msra.mxu0 %v277
    %436 = vmatprep.subr.mxu0 0.0
    %437 = vmatpush1.msra.mxu0 %v278
    %438 = vmatprep.subr.mxu0 0.0
    %439 = vmatpush1.msra.mxu0 %v279
    %440 = vmatprep.subr.mxu0 0.0
    %441 = vmatpush1.msra.mxu0 0.0
    %442 = vmatprep.subr.mxu0 0.0
    %443 = vmatpush1.msra.mxu0 0.0
    %444 = vmatprep.subr.mxu0 0.0
    %445 = vmatpush1.msra.mxu0 0.0
    %446 = vmatprep.subr.mxu0 0.0
    %447 = vmatpush1.msra.mxu0 0.0
    %448 = vmatprep.subr.mxu0 0.0
    %449 = vmatpush1.msra.mxu0 0.0
    %450 = vmatprep.subr.mxu0 0.0
    %451 = vmatpush1.msra.mxu0 0.0
    %452 = vmatprep.subr.mxu0 0.0
    %453 = vmatpush1.msra.mxu0 0.0
    %454 = vmatprep.subr.mxu0 0.0
    %455 = vmatpush1.msra.mxu0 0.0
    %456 = vmatprep.subr.mxu0 0.0
    %457 = vmatpush1.msra.mxu0 0.0
    %458 = vmatprep.subr.mxu0 0.0
    %459 = vmatpush1.msra.mxu0 0.0
    %460 = vmatprep.subr.mxu0 0.0
    %461 = vmatpush1.msra.mxu0 0.0
    %462 = vmatprep.subr.mxu0 0.0
    %463 = vmatpush1.msra.mxu0 0.0
    %464 = vmatprep.subr.mxu0 0.0
    %465 = vmatpush1.msra.mxu0 0.0
    %466 = vmatprep.subr.mxu0 0.0
    %467 = vmatpush1.msra.mxu0 0.0
    %468 = vmatprep.subr.mxu0 0.0
    %469 = vmatpush1.msra.mxu0 0.0
    %470 = vmatprep.subr.mxu0 0.0
    %471 = vmatpush1.msra.mxu0 0.0
    %472 = vmatprep.mubr.f32.mxu0 0.0
    %473 = vmatmul.mubr.f32.gmra.mrb[0].mxu0 %v407
    %v474 = vpop.f32.mrb[0].mxu0
    %v475 = vadd.f32 0.0, %v474
    %v476 = vpop.f32.mrb[0].mxu0
    %477 = vdwg.mxu0
    %v478 = vmul.f32 %v475, 0.00048828125
    %v479 = vld [vmem:[%s3] sm:$0x1]
    %v480 = vadd.f32 %v478, 1e-05
    %v481 = vrsqrt.pop %v480
    %v482 = vmul.f32 %v479, %v481
    %v484 = vlaneseq
    %v485 = vshrl.u32 %v484, 7
    %v486 = vsub.s32 0, %v485
    %v487 = vrot.slane %v482, %v486
    %v489 = vmul.f32 %v355, %v487
    %v490 = vmul.f32 %v356, %v487
    %v491 = vmul.f32 %v357, %v487
    %v492 = vmul.f32 %v358, %v487
    %v493 = vmul.f32 %v359, %v487
    %v494 = vmul.f32 %v360, %v487
    %v495 = vmul.f32 %v361, %v487
    %v496 = vmul.f32 %v362, %v487
    %v497 = vmul.f32 %v363, %v487
    %v498 = vmul.f32 %v364, %v487
    %v499 = vmul.f32 %v365, %v487
    %v500 = vmul.f32 %v366, %v487
    %v501 = vmul.f32 %v367, %v487
    %v502 = vmul.f32 %v368, %v487
    %v503 = vmul.f32 %v369, %v487
    %v504 = vmul.f32 %v370, %v487
    %v505 = vld [vmem:[%s4] sm:$0x1]
    %v507 = vlaneseq
    %v508 = vshrl.u32 %v507, 7
    %v509 = vsub.s32 0, %v508
    %v510 = vrot.slane %v505, %v509
    %v512 = vadd.f32 %v489, %v510
    %v513 = vadd.f32 %v490, %v510
    %v514 = vadd.f32 %v491, %v510
    %v515 = vadd.f32 %v492, %v510
    %v516 = vadd.f32 %v493, %v510
    %v517 = vadd.f32 %v494, %v510
    %v518 = vadd.f32 %v495, %v510
    %v519 = vadd.f32 %v496, %v510
    %v520 = vadd.f32 %v497, %v510
    %v521 = vadd.f32 %v498, %v510
    %v522 = vadd.f32 %v499, %v510
    %v523 = vadd.f32 %v500, %v510
    %v524 = vadd.f32 %v501, %v510
    %v525 = vadd.f32 %v502, %v510
    %v526 = vadd.f32 %v503, %v510
    %v527 = vadd.f32 %v504, %v510
    %v528 = vmax.f32 %v512, 0.0
    %v529 = vmax.f32 %v513, 0.0
    %v530 = vmax.f32 %v514, 0.0
    %v531 = vmax.f32 %v515, 0.0
    %v532 = vmax.f32 %v516, 0.0
    %v533 = vmax.f32 %v517, 0.0
    %v534 = vmax.f32 %v518, 0.0
    %v535 = vmax.f32 %v519, 0.0
    %v536 = vmax.f32 %v520, 0.0
    %v537 = vmax.f32 %v521, 0.0
    %v538 = vmax.f32 %v522, 0.0
    %v539 = vmax.f32 %v523, 0.0
    %v540 = vmax.f32 %v524, 0.0
    %v541 = vmax.f32 %v525, 0.0
    %v542 = vmax.f32 %v526, 0.0
    %v543 = vmax.f32 %v527, 0.0
    %544 = vst [vmem:[#allocation2] sm:$0xff] %v528
    %545 = vst [vmem:[#allocation2 + $0x8] sm:$0xff] %v529
    %546 = vst [vmem:[#allocation2 + $0x10] sm:$0xff] %v530
    %547 = vst [vmem:[#allocation2 + $0x18] sm:$0xff] %v531
    %548 = vst [vmem:[#allocation2 + $0x20] sm:$0xff] %v532
    %549 = vst [vmem:[#allocation2 + $0x28] sm:$0xff] %v533
    %550 = vst [vmem:[#allocation2 + $0x30] sm:$0xff] %v534
    %551 = vst [vmem:[#allocation2 + $0x38] sm:$0xff] %v535
    %552 = vst [vmem:[#allocation2 + $0x40] sm:$0xff] %v536
    %553 = vst [vmem:[#allocation2 + $0x48] sm:$0xff] %v537
    %554 = vst [vmem:[#allocation2 + $0x50] sm:$0xff] %v538
    %555 = vst [vmem:[#allocation2 + $0x58] sm:$0xff] %v539
    %556 = vst [vmem:[#allocation2 + $0x60] sm:$0xff] %v540
    %557 = vst [vmem:[#allocation2 + $0x68] sm:$0xff] %v541
    %558 = vst [vmem:[#allocation2 + $0x70] sm:$0xff] %v542
    %559 = vst [vmem:[#allocation2 + $0x78] sm:$0xff] %v543
    // Predicated region
    $region26: #{tpu_custom_call.1} parent=1 // pred_check
      _
    $region27: #{tpu_custom_call.1} parent=1 // pred_check_branch
      %561 = sbr.rel (0) target = $region29
    $region28: #{tpu_custom_call.1} parent=1 // pred_region
      %s563 = ssub.s32 2048, 2048
      %564 = vsyncadd [#allocation3], %s563
      %s565 = sshll.u32 [#allocation2], 4
      %s566 = int_to_ptr.vmem [resolvable:$true] %s565
      %571 = dma.vmem_to_hbm [thread:$0]  %s566, 2048, %s6, [#allocation3], 128, 128, 8
    $region29: #{tpu_custom_call.1} parent=1 // pred_fallthru
      _
    // Predicated region
    $region30: #{tpu_custom_call.1} parent=1 // pred_check
      _
    $region31: #{tpu_custom_call.1} parent=1 // pred_check_branch
      %573 = sbr.rel (0) target = $region33
    $region32: #{tpu_custom_call.1} parent=1 // pred_region
      %574 = dma.done [#allocation3], 2048
    $region33: #{tpu_custom_call.1} parent=1 // pred_fallthru
      _
    %575 = vsyncpa [#allocation3], 1

</llo_original>
